<compile_context>
chip_gen: v5e
topology: v5e:2x2
jax: 0.10.0
libtpu: 0.0.40
codegen_flags: <defaults>
</compile_context>

<pallas_src>
import functools

import jax
import jax.numpy as jnp
from jax.experimental import pallas as pl
from jax.experimental.pallas import tpu as pltpu

IN_DIM = 10
HID_DIM = 5
OUT_DIM = 2

IN_PAD = 16    # 10 -> 16 (sublane granule for f32 is 8)
HID_PAD = 8    # 5  -> 8
OUT_PAD = 8    # 2  -> 8 (kept aligned for the MXU; only 2 rows are stored)
LANE = 128     # batch (lane dim) granule


def mlp_kernel(xt_ref, w1t_ref, b1t_ref, w2t_ref, b2t_ref, ot_ref):
    # xt_ref:  (IN_PAD, tb)   batch in lanes
    # w1t_ref: (HID_PAD, IN_PAD)   b1t_ref: (HID_PAD, 1)
    # w2t_ref: (OUT_PAD, HID_PAD)  b2t_ref: (OUT_PAD, 1)
    # ot_ref:  (OUT_DIM, tb)
    xt = xt_ref[...]
    ht = jnp.dot(w1t_ref[...], xt, preferred_element_type=jnp.float32)   # (8, tb)
    ht = jnp.maximum(ht + b1t_ref[...], 0.0)     # padded hidden rows stay exactly 0
    yt = jnp.dot(w2t_ref[...], ht, preferred_element_type=jnp.float32)   # (8, tb)
    yt = yt + b2t_ref[...]
    # Store only the 2 real output rows: lane-dense, 8 B/row of HBM writeback.
    ot_ref[...] = yt[:OUT_DIM, :].astype(ot_ref.dtype)


def _pad_params(w1, b1, w2, b2):
    # Transposed, sublane-granule-padded parameters. Zero padding contributes
    # nothing to the math, so semantics are unchanged.
    w1t = jnp.zeros((HID_PAD, IN_PAD), jnp.float32).at[:HID_DIM, :IN_DIM].set(
        w1.T.astype(jnp.float32))
    b1t = jnp.zeros((HID_PAD, 1), jnp.float32).at[:HID_DIM, 0].set(
        b1.reshape(-1).astype(jnp.float32))
    w2t = jnp.zeros((OUT_PAD, HID_PAD), jnp.float32).at[:OUT_DIM, :HID_DIM].set(
        w2.T.astype(jnp.float32))
    b2t = jnp.zeros((OUT_PAD, 1), jnp.float32).at[:OUT_DIM, 0].set(
        b2.reshape(-1).astype(jnp.float32))
    return w1t, b1t, w2t, b2t


@functools.partial(jax.jit, static_argnames=("tile_b",))
def simple_mlp(x, w1, b1, w2, b2, *, tile_b=8192):
    """x: (B, 10); w1: (10, 5); b1: (5,); w2: (5, 2); b2: (2,).  Returns (B, 2)."""
    B = x.shape[0]
    w1t, b1t, w2t, b2t = _pad_params(w1, b1, w2, b2)

    # Grid over the batch (lane) dimension. Keep >= 2 steps for non-trivial
    # batches so the "parallel" axis can span v7x's two TensorCores.
    grid_n = -(-B // tile_b)
    if B >= 2 * LANE and grid_n < 2:
        grid_n = 2
    rows_per_step = -(-B // grid_n)
    tb = -(-rows_per_step // LANE) * LANE        # per-step tile, multiple of 128
    Bp = tb * grid_n

    # Single fused pad+transpose pass over x: (B, 10) -> (IN_PAD, Bp), zeros
    # in the padded features/lanes (sliced off after the kernel).
    xt = jnp.pad(x.astype(jnp.float32).T, ((0, IN_PAD - IN_DIM), (0, Bp - B)))

    out_t = pl.pallas_call(
        mlp_kernel,
        out_shape=jax.ShapeDtypeStruct((OUT_DIM, Bp), jnp.float32),
        grid_spec=pltpu.PrefetchScalarGridSpec(
            num_scalar_prefetch=0,
            grid=(grid_n,),
            in_specs=[
                pl.BlockSpec((IN_PAD, tb), lambda i: (0, i)),        # x^T: streamed per tile
                pl.BlockSpec((HID_PAD, IN_PAD), lambda i: (0, 0)),   # w1^T: VMEM-resident
                pl.BlockSpec((HID_PAD, 1), lambda i: (0, 0)),        # b1:   VMEM-resident
                pl.BlockSpec((OUT_PAD, HID_PAD), lambda i: (0, 0)),  # w2^T: VMEM-resident
                pl.BlockSpec((OUT_PAD, 1), lambda i: (0, 0)),        # b2:   VMEM-resident
            ],
            out_specs=pl.BlockSpec((OUT_DIM, tb), lambda i: (0, i)),
        ),
        compiler_params=pltpu.CompilerParams(
            dimension_semantics=("parallel",),   # v7x: split batch tiles across 2 TCs
        ),
    )(xt, w1t, b1t, w2t, b2t)

    # Drop lane padding and transpose back to (B, OUT_DIM).
    return out_t[:, :B].T.astype(x.dtype)


def init_params(key):
    # Matches nn.Linear shapes (stored pre-transposed):
    # fc1: weight (5, 10), bias (5,)  -> w1 (10, 5)
    # fc2: weight (2, 5),  bias (2,)  -> w2 (5, 2)
    k1, k2, k3, k4 = jax.random.split(key, 4)
    bound1 = 1.0 / jnp.sqrt(10.0)
    bound2 = 1.0 / jnp.sqrt(5.0)
    w1 = jax.random.uniform(k1, (IN_DIM, HID_DIM), jnp.float32, -bound1, bound1)
    b1 = jax.random.uniform(k2, (HID_DIM,), jnp.float32, -bound1, bound1)
    w2 = jax.random.uniform(k3, (HID_DIM, OUT_DIM), jnp.float32, -bound2, bound2)
    b2 = jax.random.uniform(k4, (OUT_DIM,), jnp.float32, -bound2, bound2)
    return w1, b1, w2, b2


def _ref(x, w1, b1, w2, b2):
    return jnp.maximum(x @ w1 + b1[None, :], 0.0) @ w2 + b2[None, :]


if __name__ == "__main__":
    key = jax.random.PRNGKey(0)
    kx, kp, kx2 = jax.random.split(key, 3)
    w1, b1, w2, b2 = init_params(kp)

    # Small-shape check: batch=8, in_features=10 (single grid step).
    x_small = jax.random.normal(kx, (8, IN_DIM), jnp.float32)
    out_small = jax.block_until_ready(simple_mlp(x_small, w1, b1, w2, b2))
    assert out_small.shape == (8, OUT_DIM)
    assert jnp.allclose(out_small, _ref(x_small, w1, b1, w2, b2), atol=1e-4, rtol=1e-4)

    # Ragged larger batch with a small tile exercises the multi-step grid,
    # lane padding, and the pipelined x^T DMA path.
    x_big = jax.random.normal(kx2, (2049, IN_DIM), jnp.float32)
    out_big = jax.block_until_ready(simple_mlp(x_big, w1, b1, w2, b2, tile_b=1024))
    assert out_big.shape == (2049, OUT_DIM)
    assert jnp.allclose(out_big, _ref(x_big, w1, b1, w2, b2), atol=1e-4, rtol=1e-4)

    print("KERNEL_OK")
</pallas_src>

<mosaic_0001>
module attributes {stable_mosaic.version = 11 : i64} {
  func.func @mlp_kernel(%arg0: i32, %arg1: memref<16x128xf32, #tpu.memory_space<vmem>>, %arg2: memref<8x16xf32, #tpu.memory_space<vmem>>, %arg3: memref<8x1xf32, #tpu.memory_space<vmem>>, %arg4: memref<8x8xf32, #tpu.memory_space<vmem>>, %arg5: memref<8x1xf32, #tpu.memory_space<vmem>>, %arg6: memref<2x128xf32, #tpu.memory_space<vmem>>) attributes {dimension_semantics = [#tpu.dimension_semantics<parallel>], iteration_bounds = array<i64: 1>, scalar_prefetch = 0 : i64, scratch_operands = 0 : i64, tpu.core_type = #tpu.core_type<tc>, window_params = [{transform_indices = @transform_0, window_bounds = array<i64: 16, 128>}, {pipeline_mode = #tpu.pipeline_mode<synchronous>, transform_indices = @transform_1, window_bounds = array<i64: 8, 16>}, {pipeline_mode = #tpu.pipeline_mode<synchronous>, transform_indices = @transform_2, window_bounds = array<i64: 8, 1>}, {pipeline_mode = #tpu.pipeline_mode<synchronous>, transform_indices = @transform_3, window_bounds = array<i64: 8, 8>}, {pipeline_mode = #tpu.pipeline_mode<synchronous>, transform_indices = @transform_4, window_bounds = array<i64: 8, 1>}, {transform_indices = @transform_5, window_bounds = array<i64: 2, 128>}]} {
    %c0 = arith.constant 0 : index
    %c0_0 = arith.constant 0 : index
    %0 = vector.load %arg1[%c0, %c0_0] : memref<16x128xf32, #tpu.memory_space<vmem>>, vector<16x128xf32>
    %c0_1 = arith.constant 0 : index
    %c0_2 = arith.constant 0 : index
    %1 = vector.load %arg2[%c0_1, %c0_2] : memref<8x16xf32, #tpu.memory_space<vmem>>, vector<8x16xf32>
    %cst = arith.constant dense<0.000000e+00> : vector<8x128xf32>
    %2 = tpu.matmul %1, %0, %cst {dimension_numbers = #tpu.dot_dimension_numbers<[1], [0], [0], [1], [0, 0, 1, 1], [], []>} : vector<8x16xf32>, vector<16x128xf32>, vector<8x128xf32> -> vector<8x128xf32>
    %c0_3 = arith.constant 0 : index
    %c0_4 = arith.constant 0 : index
    %3 = vector.load %arg3[%c0_3, %c0_4] : memref<8x1xf32, #tpu.memory_space<vmem>>, vector<8x1xf32>
    %4 = vector.broadcast %3 : vector<8x1xf32> to vector<8x128xf32>
    %5 = arith.addf %2, %4 : vector<8x128xf32>
    %cst_5 = arith.constant 0.000000e+00 : f32
    %6 = vector.broadcast %cst_5 : f32 to vector<8x128xf32>
    %7 = arith.maximumf %5, %6 : vector<8x128xf32>
    %c0_6 = arith.constant 0 : index
    %c0_7 = arith.constant 0 : index
    %8 = vector.load %arg4[%c0_6, %c0_7] : memref<8x8xf32, #tpu.memory_space<vmem>>, vector<8x8xf32>
    %cst_8 = arith.constant dense<0.000000e+00> : vector<8x128xf32>
    %9 = tpu.matmul %8, %7, %cst_8 {dimension_numbers = #tpu.dot_dimension_numbers<[1], [0], [0], [1], [0, 0, 1, 1], [], []>} : vector<8x8xf32>, vector<8x128xf32>, vector<8x128xf32> -> vector<8x128xf32>
    %c0_9 = arith.constant 0 : index
    %c0_10 = arith.constant 0 : index
    %10 = vector.load %arg5[%c0_9, %c0_10] : memref<8x1xf32, #tpu.memory_space<vmem>>, vector<8x1xf32>
    %11 = vector.broadcast %10 : vector<8x1xf32> to vector<8x128xf32>
    %12 = arith.addf %9, %11 : vector<8x128xf32>
    %13 = vector.extract_strided_slice %12 {offsets = [0, 0], sizes = [2, 128], strides = [1, 1]} : vector<8x128xf32> to vector<2x128xf32>
    %c0_11 = arith.constant 0 : index
    %c0_12 = arith.constant 0 : index
    %14 = vector.load %arg6[%c0_11, %c0_12] : memref<2x128xf32, #tpu.memory_space<vmem>>, vector<2x128xf32>
    tpu.vector_store %arg6[%c0_11, %c0_12], %13 {strides = array<i32>} : memref<2x128xf32, #tpu.memory_space<vmem>>, vector<2x128xf32>,
    return
  }
  func.func @transform_0(%arg0: i32) -> (i32, i32) {
    %c0_i32 = arith.constant 0 : i32
    %c0_i32_0 = arith.constant 0 : i32
    return %c0_i32, %arg0 : i32, i32
  }
  func.func @transform_1(%arg0: i32) -> (i32, i32) {
    %c0_i32 = arith.constant 0 : i32
    %c0_i32_0 = arith.constant 0 : i32
    %c0_i32_1 = arith.constant 0 : i32
    return %c0_i32, %c0_i32_0 : i32, i32
  }
  func.func @transform_2(%arg0: i32) -> (i32, i32) {
    %c0_i32 = arith.constant 0 : i32
    %c0_i32_0 = arith.constant 0 : i32
    %c0_i32_1 = arith.constant 0 : i32
    return %c0_i32, %c0_i32_0 : i32, i32
  }
  func.func @transform_3(%arg0: i32) -> (i32, i32) {
    %c0_i32 = arith.constant 0 : i32
    %c0_i32_0 = arith.constant 0 : i32
    %c0_i32_1 = arith.constant 0 : i32
    return %c0_i32, %c0_i32_0 : i32, i32
  }
  func.func @transform_4(%arg0: i32) -> (i32, i32) {
    %c0_i32 = arith.constant 0 : i32
    %c0_i32_0 = arith.constant 0 : i32
    %c0_i32_1 = arith.constant 0 : i32
    return %c0_i32, %c0_i32_0 : i32, i32
  }
  func.func @transform_5(%arg0: i32) -> (i32, i32) {
    %c0_i32 = arith.constant 0 : i32
    %c0_i32_0 = arith.constant 0 : i32
    return %c0_i32, %arg0 : i32, i32
  }
}

</mosaic_0001>

<llo_original>
// kernel: simple_mlp.1
$region0: #{simple_mlp.1}
  #allocation0 [shape = 'u32[]', space=smem, size = 0x4, offset = 0x4, fixed_abs, tag = 'smem constant byte address 0x4 - core index']
  #allocation1 [shape = 'u32[72,128]{1,0:T(1,128)}', space=vmem, size = 0x9000, scoped, tag = 'internal scratch']
  %s0 = inlined_call_operand.vmem [shape: f32[16,128], index: 0, kind: input, shape index: {}]
  %s1 = inlined_call_operand.vmem [shape: f32[8,16], index: 1, kind: input, shape index: {}]
  %s2 = inlined_call_operand.vmem [shape: f32[8,1], index: 2, kind: input, shape index: {}]
  %s3 = inlined_call_operand.vmem [shape: f32[8,8], index: 3, kind: input, shape index: {}]
  %s4 = inlined_call_operand.vmem [shape: f32[8,1], index: 4, kind: input, shape index: {}]
  %s5 = inlined_call_operand.vmem [shape: f32[2,128], index: 5, kind: output, shape index: {}]
  %s6 = sld [smem:[#allocation0]]
  $region30: #{simple_mlp.1} parent=0
    _
  %s8 = ssub.s32 1, %s6
  %s9 = scalar_select 0, %s8, %s6
  // Predicated region
  $region2: #{simple_mlp.1} parent=0 // pred_check
    _
  $region3: #{simple_mlp.1} parent=0 // pred_check_branch
    %11 = sbr.rel (0) target = $region5
  $region4: #{simple_mlp.1} parent=0 // pred_region
    _
  $region5: #{simple_mlp.1} parent=0 // pred_fallthru
    _
  // Predicated region
  $region6: #{simple_mlp.1} parent=0 // pred_check
    _
  $region7: #{simple_mlp.1} parent=0 // pred_check_branch
    %13 = sbr.rel (0) target = $region9
  $region8: #{simple_mlp.1} parent=0 // pred_region
    _
  $region9: #{simple_mlp.1} parent=0 // pred_fallthru
    _
  // Predicated region
  $region10: #{simple_mlp.1} parent=0 // pred_check
    _
  $region11: #{simple_mlp.1} parent=0 // pred_check_branch
    %15 = sbr.rel (0) target = $region13
  $region12: #{simple_mlp.1} parent=0 // pred_region
    _
  $region13: #{simple_mlp.1} parent=0 // pred_fallthru
    _
  // Predicated region
  $region14: #{simple_mlp.1} parent=0 // pred_check
    _
  $region15: #{simple_mlp.1} parent=0 // pred_check_branch
    %17 = sbr.rel (0) target = $region17
  $region16: #{simple_mlp.1} parent=0 // pred_region
    _
  $region17: #{simple_mlp.1} parent=0 // pred_fallthru
    _
  // Predicated region
  $region18: #{simple_mlp.1} parent=0 // pred_check
    _
  $region19: #{simple_mlp.1} parent=0 // pred_check_branch
    %19 = sbr.rel (0) target = $region21
  $region20: #{simple_mlp.1} parent=0 // pred_region
    _
  $region21: #{simple_mlp.1} parent=0 // pred_fallthru
    _
  %v20 = vld [vmem:[%s0] sm:$0xff]
  %v21 = vld [vmem:[%s0 + $0x8] sm:$0xff]
  %v22 = vld [vmem:[%s1] sm:$0xff]
  %v23 = vld [vmem:[%s2] sm:$0xff]
  %25 = vset.pattern.permute.xlu0 0
  %26 = vperm.xlu0 %25, %v23
  %v27 = vpop.permute.xlu0 %26
  %vm29 = vcmask 130048
  %v31 = vsel %vm29, %v22, 0
  %33 = vmatpush.msra.mxu0 0.0
  %34 = vmatpush.msra.mxu0 0.0
  %35 = vmatpush.msra.mxu0 0.0
  %36 = vmatpush.msra.mxu0 0.0
  %37 = vmatpush.msra.mxu0 0.0
  %38 = vmatpush.msra.mxu0 0.0
  %39 = vmatpush.msra.mxu0 0.0
  %40 = vmatpush.msra.mxu0 0.0
  %41 = vmatpush.msra.mxu0 0.0
  %42 = vmatpush.msra.mxu0 0.0
  %43 = vmatpush.msra.mxu0 0.0
  %44 = vmatpush.msra.mxu0 0.0
  %45 = vmatpush.msra.mxu0 0.0
  %46 = vmatpush.msra.mxu0 0.0
  %47 = vmatpush.msra.mxu0 %v21
  %48 = vmatpush.msra.mxu0 %v20
  %49 = vmatmul.f32.gmra.mxu0 %v31
  %v50 = vpop.f32.mrf.mxu0
  %v51 = vadd.f32 %v27, %v50
  %52 = vdwg.mxu0
  %v53 = vmax.f32 %v51, 0.0
  %v54 = vld [vmem:[%s3] sm:$0xff]
  %v55 = vld [vmem:[%s4] sm:$0xff]
  %57 = vset.pattern.permute.xlu0 0
  %58 = vperm.xlu0 %57, %v55
  %v59 = vpop.permute.xlu0 %58
  %vm61 = vcmask 64512
  %v63 = vsel %vm61, %v54, 0
  %65 = vmatpush.msra.mxu0 0.0
  %66 = vmatpush.msra.mxu0 0.0
  %67 = vmatpush.msra.mxu0 0.0
  %68 = vmatpush.msra.mxu0 0.0
  %69 = vmatpush.msra.mxu0 0.0
  %70 = vmatpush.msra.mxu0 0.0
  %71 = vmatpush.msra.mxu0 0.0
  %72 = vmatpush.msra.mxu0 0.0
  %73 = vmatpush.msra.mxu0 0.0
  %74 = vmatpush.msra.mxu0 0.0
  %75 = vmatpush.msra.mxu0 0.0
  %76 = vmatpush.msra.mxu0 0.0
  %77 = vmatpush.msra.mxu0 0.0
  %78 = vmatpush.msra.mxu0 0.0
  %79 = vmatpush.msra.mxu0 0.0
  %80 = vmatpush.msra.mxu0 %v53
  %81 = vmatmul.f32.gmra.mxu0 %v63
  %v82 = vpop.f32.mrf.mxu0
  %v83 = vadd.f32 %v59, %v82
  %84 = vdwg.mxu0
  %85 = vst [vmem:[%s5] sm:$0x3] %v83
  // Predicated region
  $region22: #{simple_mlp.1} parent=0 // pred_check
    _
  $region23: #{simple_mlp.1} parent=0 // pred_check_branch
    %87 = sbr.rel (0) target = $region25
  $region24: #{simple_mlp.1} parent=0 // pred_region
    _
  $region25: #{simple_mlp.1} parent=0 // pred_fallthru
    _
  // Predicated region
  $region26: #{simple_mlp.1} parent=0 // pred_check
    _
  $region27: #{simple_mlp.1} parent=0 // pred_check_branch
    %89 = sbr.rel (0) target = $region29
  $region28: #{simple_mlp.1} parent=0 // pred_region
    _
  $region29: #{simple_mlp.1} parent=0 // pred_fallthru
    _

</llo_original>
